<compile_context>
chip_gen: v7x
topology: tpu7x:2x2x1
jax: 0.10.0
libtpu: 0.0.40
codegen_flags: <defaults>
</compile_context>

<pallas_src>
import jax
import jax.numpy as jnp
from jax.experimental import pallas as pl
from jax.experimental.pallas import tpu as pltpu

_LANE = 128
_SUBLANE = 8
_FAST_PATH_ELEMS = 1 << 18  # below this, a fused XLA reduce is strictly faster


def _vdn_sum_kernel(x_ref, o_ref):
    # x_ref: (A, SUB, LANE) -- A full-density (sublane x lane) tiles.
    # o_ref: (SUB, LANE)    -- fully lane/sublane-dense output tile.
    # Leading-axis sum = A-1 dense VPU adds, accumulated in float32.
    o_ref[...] = jnp.sum(x_ref[...].astype(jnp.float32), axis=0).astype(o_ref.dtype)


def _choose_sub(n_lane_rows: int, n_agents: int, itemsize: int) -> int:
    """Sublane-rows per block (multiple of 8), ~4 MiB of input per block."""
    budget = 4 * 1024 * 1024
    sub = budget // max(1, n_agents * _LANE * itemsize)
    sub = max(_SUBLANE, (sub // _SUBLANE) * _SUBLANE)
    if sub >= n_lane_rows:
        if n_lane_rows >= 4 * _SUBLANE:
            # Keep >= 2 blocks so ("parallel",) can shard across both v7x
            # TensorCores and DMA overlaps compute in the pipeline.
            sub = pl.cdiv(pl.cdiv(n_lane_rows, 2), _SUBLANE) * _SUBLANE
        else:
            sub = max(_SUBLANE, pl.cdiv(n_lane_rows, _SUBLANE) * _SUBLANE)
    return sub


def _vdn_mixer_pallas(agent_qs: jax.Array) -> jax.Array:
    B, T, A = agent_qs.shape
    rows = B * T
    dtype = agent_qs.dtype
    itemsize = jnp.dtype(dtype).itemsize

    # Lane-dense slab: (A, rows_pad), rows padded only to a multiple of
    # 8*128 = 1024 so it splits into full (sublane, lane) tiles.  Zero padding
    # cannot perturb valid sums; padded rows are sliced off below.
    rows_pad = pl.cdiv(rows, _SUBLANE * _LANE) * (_SUBLANE * _LANE)
    x_t = agent_qs.reshape(rows, A).T                    # (A, rows)
    if rows_pad != rows:
        x_t = jnp.pad(x_t, ((0, 0), (0, rows_pad - rows)))
    n_lane_rows = rows_pad // _LANE
    x3 = x_t.reshape(A, n_lane_rows, _LANE)              # free row-major split

    sub = _choose_sub(n_lane_rows, A, itemsize)
    grid = (pl.cdiv(n_lane_rows, sub),)  # last block may be partial -> Pallas
                                         # masks the output write-back.

    in_block_bytes = A * sub * _LANE * itemsize
    out_block_bytes = sub * _LANE * itemsize
    vmem_limit = 2 * (in_block_bytes + out_block_bytes) + (2 << 20)
    vmem_limit = min(max(vmem_limit, 16 << 20), 32 << 20)

    out2d = pl.pallas_call(
        _vdn_sum_kernel,
        out_shape=jax.ShapeDtypeStruct((n_lane_rows, _LANE), dtype),
        grid=grid,
        in_specs=[pl.BlockSpec((A, sub, _LANE), lambda i: (0, i, 0))],
        out_specs=pl.BlockSpec((sub, _LANE), lambda i: (i, 0)),
        compiler_params=pltpu.CompilerParams(
            # Independent row tiles: lets v7x shard the grid over both TCs.
            dimension_semantics=("parallel",),
            vmem_limit_bytes=vmem_limit,
        ),
        cost_estimate=pl.CostEstimate(
            flops=rows_pad * max(A - 1, 0),
            transcendentals=0,
            bytes_accessed=(A + 1) * rows_pad * itemsize,
        ),
    )(x3)

    return out2d.reshape(rows_pad)[:rows].reshape(B, T, 1)


def vdn_mixer_forward(agent_qs: jax.Array, use_pallas=None) -> jax.Array:
    """agent_qs: (B, T, A) -> (B, T, 1), sum over the agent axis."""
    B, T, A = agent_qs.shape
    if use_pallas is None:
        # Small/medium inputs are dominated by the wrapper transpose and
        # launch overhead; a fused XLA reduce wins there.
        use_pallas = (B * T * A) >= _FAST_PATH_ELEMS
    if not use_pallas:
        return jnp.sum(agent_qs, axis=2, keepdims=True)
    return _vdn_mixer_pallas(agent_qs)


if __name__ == "__main__":
    # VDNMixer has no parameters (its __init__ defines none).
    key = jax.random.PRNGKey(0)
    B, T, A = 2, 8, 4  # batch, episode length, number of agents
    agent_qs = jax.random.normal(key, (B, T, A), dtype=jnp.float32)

    # Force the Pallas path so the kernel itself is exercised at this size.
    out = jax.block_until_ready(vdn_mixer_forward(agent_qs, use_pallas=True))
    ref = jnp.sum(agent_qs, axis=2, keepdims=True)
    assert out.shape == (B, T, 1), out.shape
    assert jnp.allclose(out, ref, atol=1e-6, rtol=1e-6)

    # Auto dispatch (small input -> fused XLA fast path).
    out_auto = jax.block_until_ready(vdn_mixer_forward(agent_qs))
    assert jnp.allclose(out_auto, ref, atol=1e-6, rtol=1e-6)

    # Non-aligned rows; multi-block grid with a partial final block, which
    # exercises Pallas' masked output write-back.
    B1, T1, A1 = 5, 1000, 4
    q1 = jax.random.normal(jax.random.PRNGKey(1), (B1, T1, A1), dtype=jnp.float32)
    out1 = jax.block_until_ready(vdn_mixer_forward(q1, use_pallas=True))
    ref1 = jnp.sum(q1, axis=2, keepdims=True)
    assert out1.shape == (B1, T1, 1), out1.shape
    assert jnp.allclose(out1, ref1, atol=1e-5, rtol=1e-5)

    # bf16 input: kernel accumulates in f32 (at least as accurate as torch's
    # native bf16 sum; tolerance covers the difference).
    B2, T2, A2 = 7, 300, 5
    q2 = jax.random.normal(jax.random.PRNGKey(2), (B2, T2, A2), dtype=jnp.bfloat16)
    out2 = jax.block_until_ready(vdn_mixer_forward(q2, use_pallas=True))
    ref2 = jnp.sum(q2.astype(jnp.float32), axis=2, keepdims=True).astype(jnp.bfloat16)
    assert out2.shape == (B2, T2, 1), out2.shape
    assert jnp.allclose(out2.astype(jnp.float32), ref2.astype(jnp.float32),
                        atol=1e-2, rtol=1e-2)

    print("KERNEL_OK")
</pallas_src>

<mosaic_0001>
module attributes {stable_mosaic.version = 11 : i64} {
  func.func @_vdn_sum_kernel(%arg0: i32, %arg1: memref<4x8x128xf32, #tpu.memory_space<vmem>>, %arg2: memref<8x128xf32, #tpu.memory_space<vmem>>) attributes {dimension_semantics = [#tpu.dimension_semantics<parallel>], iteration_bounds = array<i64: 1>, scalar_prefetch = 0 : i64, scratch_operands = 0 : i64, tpu.core_type = #tpu.core_type<tc>, window_params = [{transform_indices = @transform_0, window_bounds = array<i64: 4, 8, 128>}, {transform_indices = @transform_1, window_bounds = array<i64: 8, 128>}]} {
    %c0 = arith.constant 0 : index
    %c0_0 = arith.constant 0 : index
    %c0_1 = arith.constant 0 : index
    %0 = vector.load %arg1[%c0, %c0_0, %c0_1] : memref<4x8x128xf32, #tpu.memory_space<vmem>>, vector<4x8x128xf32>
    %cst = arith.constant dense<0.000000e+00> : vector<8x128xf32>
    %1 = vector.multi_reduction <add>, %0, %cst [0] : vector<4x8x128xf32> to vector<8x128xf32>
    %c0_2 = arith.constant 0 : index
    %c0_3 = arith.constant 0 : index
    %2 = vector.load %arg2[%c0_2, %c0_3] : memref<8x128xf32, #tpu.memory_space<vmem>>, vector<8x128xf32>
    tpu.vector_store %arg2[%c0_2, %c0_3], %1 {strides = array<i32>} : memref<8x128xf32, #tpu.memory_space<vmem>>, vector<8x128xf32>,
    return
  }
  func.func @transform_0(%arg0: i32) -> (i32, i32, i32) {
    %c0_i32 = arith.constant 0 : i32
    %c0_i32_0 = arith.constant 0 : i32
    %c0_i32_1 = arith.constant 0 : i32
    return %c0_i32, %arg0, %c0_i32_0 : i32, i32, i32
  }
  func.func @transform_1(%arg0: i32) -> (i32, i32) {
    %c0_i32 = arith.constant 0 : i32
    %c0_i32_0 = arith.constant 0 : i32
    return %arg0, %c0_i32 : i32, i32
  }
}

</mosaic_0001>

<llo_original>
// kernel: tpu_custom_call.1
$region0: #{tpu_custom_call.1}
  #allocation0 [shape = 'u32[]', space=smem, size = 0x4, offset = 0x4, fixed_abs, tag = 'smem constant byte address 0x4 - core index']
  #allocation1 [shape = 'u32[144,128]{1,0:T(1,128)}', space=vmem, size = 0x12000, scoped, tag = 'internal scratch']
  %s0 = inlined_call_operand.hbm [shape: f32[4,8,128], index: 0, kind: input, shape index: {}]
  %s1 = inlined_call_operand.hbm [shape: f32[8,128], index: 1, kind: output, shape index: {}]
  %s2 = sld [smem:[#allocation0]]
  $region18: #{tpu_custom_call.1} parent=0
    _
  %s4 = ssub.s32 1, %s2
  %s5 = scalar_select 0, %s4, %s2
  $region1: #{tpu_custom_call.1} parent=0
    #allocation2 [shape = 'u8[16384]{0}', space=vmem, size = 0x4000, scoped, tag = 'input window, operand 0, single buffered']
    #allocation3 [shape = 's32[1]{0}', space=sflag, size = 0x4, scoped, tag = 'scoped memory for tpu_custom_call.1']
    #allocation4 [shape = 's32[1]{0}', space=sflag, size = 0x4, scoped, tag = 'scoped memory for tpu_custom_call.1']
    #allocation5 [shape = 'u8[4096]{0}', space=vmem, size = 0x1000, scoped, tag = 'output window, operand 0, single buffered']
    %6 = vsyncpa [#allocation3], 0
    %7 = vsyncpa [#allocation4], 0
    // Predicated region
    $region2: #{tpu_custom_call.1} parent=1 // pred_check
      _
    $region3: #{tpu_custom_call.1} parent=1 // pred_check_branch
      %9 = sbr.rel (0) target = $region5
    $region4: #{tpu_custom_call.1} parent=1 // pred_region
      %s11 = ssub.s32 512, 512
      %12 = vsyncadd [#allocation3], %s11
      %s13 = sshll.u32 [#allocation2], 4
      %s14 = int_to_ptr.vmem [resolvable:$true] %s13
      %19 = dma.hbm_to_vmem [thread:$0]  %s0, 512, %s14, [#allocation3], 128, 128, 8
    $region5: #{tpu_custom_call.1} parent=1 // pred_fallthru
      _
    // Predicated region
    $region6: #{tpu_custom_call.1} parent=1 // pred_check
      _
    $region7: #{tpu_custom_call.1} parent=1 // pred_check_branch
      %21 = sbr.rel (0) target = $region9
    $region8: #{tpu_custom_call.1} parent=1 // pred_region
      %22 = dma.done [#allocation3], 512
    $region9: #{tpu_custom_call.1} parent=1 // pred_fallthru
      _
    %v23 = vld [vmem:[#allocation2] sm:$0xff]
    %v24 = vld [vmem:[#allocation2 + $0x8] sm:$0xff]
    %v25 = vld [vmem:[#allocation2 + $0x10] sm:$0xff]
    %v26 = vld [vmem:[#allocation2 + $0x18] sm:$0xff]
    %v27 = vadd.f32 %v23, %v24
    %v28 = vadd.f32 %v27, %v25
    %v29 = vadd.f32 %v28, %v26
    %30 = vst [vmem:[#allocation5] sm:$0xff] %v29
    // Predicated region
    $region10: #{tpu_custom_call.1} parent=1 // pred_check
      _
    $region11: #{tpu_custom_call.1} parent=1 // pred_check_branch
      %32 = sbr.rel (0) target = $region13
    $region12: #{tpu_custom_call.1} parent=1 // pred_region
      %s34 = ssub.s32 128, 128
      %35 = vsyncadd [#allocation4], %s34
      %s37 = sshll.u32 [#allocation5], 4
      %s38 = int_to_ptr.vmem [resolvable:$true] %s37
      %40 = dma.vmem_to_hbm [thread:$0]  %s38, 128, %s1, [#allocation4]
    $region13: #{tpu_custom_call.1} parent=1 // pred_fallthru
      _
    // Predicated region
    $region14: #{tpu_custom_call.1} parent=1 // pred_check
      _
    $region15: #{tpu_custom_call.1} parent=1 // pred_check_branch
      %42 = sbr.rel (0) target = $region17
    $region16: #{tpu_custom_call.1} parent=1 // pred_region
      %43 = dma.done [#allocation4], 128
    $region17: #{tpu_custom_call.1} parent=1 // pred_fallthru
      _
    %44 = vsyncpa [#allocation3], 1
    %45 = vsyncpa [#allocation4], 1

</llo_original>
